<compile_context>
chip_gen: v5e
topology: v5e:2x2
jax: 0.10.0
libtpu: 0.0.40
codegen_flags: <defaults>
</compile_context>

<pallas_src>
import jax
import jax.numpy as jnp
from jax.experimental import pallas as pl
from jax.experimental.pallas import tpu as pltpu

W_LANES = 128  # one full lane group


def _conv3x3_kernel(w_ref, b_ref, x_ref, o_ref):
    # w_ref: (9,) f32 SMEM (flattened 3x3 taps), b_ref: (1,) f32 SMEM.
    # x_ref: (N, H, W) f32 VMEM.  o_ref: (N, H-2, W-2) f32 VMEM (valid window).
    n, h_out, w_out = o_ref.shape

    # Hoist all scalar SMEM reads before the vector work.
    w = [w_ref[i] for i in range(9)]
    b = b_ref[0]

    # Row (kh) shifts as per-image offset loads: (N, h_out, W) each.
    rows = [x_ref[:, kh:kh + h_out, :] for kh in range(3)]

    # Factor the column (kw) shift out of the tap loop: reduce over kh first
    # with 9 scalar*vector FMAs (no shifts), giving one column-sum per kw.
    cs = [
        w[0 + kw] * rows[0] + w[3 + kw] * rows[1] + w[6 + kw] * rows[2]
        for kw in range(3)
    ]

    # Apply each lane shift exactly once (static slices of the column sums),
    # accumulate with the bias, and store the valid window directly.
    acc = (
        b
        + cs[0][:, :, 0:w_out]
        + cs[1][:, :, 1:1 + w_out]
        + cs[2][:, :, 2:2 + w_out]
    )
    o_ref[...] = acc.astype(o_ref.dtype)


def conv2d_1x1ch_3x3(x, weight, bias):
    """Conv2d(1, 1, kernel_size=3, stride=1, padding=0) forward.

    x: (N, 1, H, W) f32, weight: (1, 1, 3, 3) f32, bias: (1,) f32
    returns: (N, 1, H-2, W-2) f32
    """
    n, c, h, w = x.shape
    assert c == 1 and weight.shape == (1, 1, 3, 3) and bias.shape == (1,)
    assert h >= 3 and 3 <= w <= W_LANES, "larger W needs lane tiling with a halo"
    h_out, w_out = h - 2, w - 2

    # Only free layout ops in the wrapper: squeeze the channel dim in, and
    # unsqueeze it back on the way out.  No pad, no slice, no HBM round trips.
    x3d = x.astype(jnp.float32).reshape(n, h, w)
    w_flat = weight.reshape(9).astype(jnp.float32)   # 1-D SMEM: 64 B
    b_1d = bias.astype(jnp.float32)

    out = pl.pallas_call(
        _conv3x3_kernel,
        out_shape=jax.ShapeDtypeStruct((n, h_out, w_out), jnp.float32),
        in_specs=[
            pl.BlockSpec(memory_space=pltpu.MemorySpace.SMEM),   # weight (9,)
            pl.BlockSpec(memory_space=pltpu.MemorySpace.SMEM),   # bias  (1,)
            pl.BlockSpec(memory_space=pltpu.MemorySpace.VMEM),   # x (N, H, W)
        ],
        out_specs=pl.BlockSpec(memory_space=pltpu.MemorySpace.VMEM),
    )(w_flat, b_1d, x3d)

    return out.reshape(n, 1, h_out, w_out)


if __name__ == "__main__":
    key = jax.random.PRNGKey(0)
    kx, kw_key, kb_key = jax.random.split(key, 3)

    # Small shapes consistent with Net: batch=2, in_channels=1, spatial=16x16.
    N, C, H, W = 2, 1, 16, 16
    x = jax.random.normal(kx, (N, C, H, W), dtype=jnp.float32)

    # Deterministic parameter init (mimics Conv2d(1, 1, 3) parameter shapes).
    bound = 1.0 / 3.0  # 1/sqrt(fan_in), fan_in = 1*3*3
    weight = jax.random.uniform(kw_key, (1, 1, 3, 3), jnp.float32, -bound, bound)
    bias = jax.random.uniform(kb_key, (1,), jnp.float32, -bound, bound)

    out = jax.block_until_ready(conv2d_1x1ch_3x3(x, weight, bias))

    # Sanity check against XLA's reference convolution.
    ref = jax.lax.conv_general_dilated(
        x, weight, window_strides=(1, 1), padding="VALID",
        dimension_numbers=("NCHW", "OIHW", "NCHW")) + bias.reshape(1, 1, 1, 1)
    assert out.shape == (N, 1, H - 2, W - 2)
    assert jnp.allclose(out, ref, atol=1e-5, rtol=1e-5), "mismatch vs reference conv"

    print("KERNEL_OK")
</pallas_src>

<mosaic_0001>
module attributes {stable_mosaic.version = 11 : i64} {
  func.func @_conv3x3_kernel(%arg0: memref<9xf32, #tpu.memory_space<smem>>, %arg1: memref<1xf32, #tpu.memory_space<smem>>, %arg2: memref<2x16x16xf32, #tpu.memory_space<vmem>>, %arg3: memref<2x14x14xf32, #tpu.memory_space<vmem>>) attributes {dimension_semantics = [], scalar_prefetch = 0 : i64, scratch_operands = 0 : i64, tpu.core_type = #tpu.core_type<tc>} {
    %c0 = arith.constant 0 : index
    %0 = memref.load %arg0[%c0] : memref<9xf32, #tpu.memory_space<smem>>
    %c1 = arith.constant 1 : index
    %1 = memref.load %arg0[%c1] : memref<9xf32, #tpu.memory_space<smem>>
    %c2 = arith.constant 2 : index
    %2 = memref.load %arg0[%c2] : memref<9xf32, #tpu.memory_space<smem>>
    %c3 = arith.constant 3 : index
    %3 = memref.load %arg0[%c3] : memref<9xf32, #tpu.memory_space<smem>>
    %c4 = arith.constant 4 : index
    %4 = memref.load %arg0[%c4] : memref<9xf32, #tpu.memory_space<smem>>
    %c5 = arith.constant 5 : index
    %5 = memref.load %arg0[%c5] : memref<9xf32, #tpu.memory_space<smem>>
    %c6 = arith.constant 6 : index
    %6 = memref.load %arg0[%c6] : memref<9xf32, #tpu.memory_space<smem>>
    %c7 = arith.constant 7 : index
    %7 = memref.load %arg0[%c7] : memref<9xf32, #tpu.memory_space<smem>>
    %c8 = arith.constant 8 : index
    %8 = memref.load %arg0[%c8] : memref<9xf32, #tpu.memory_space<smem>>
    %c0_0 = arith.constant 0 : index
    %9 = memref.load %arg1[%c0_0] : memref<1xf32, #tpu.memory_space<smem>>
    %c0_1 = arith.constant 0 : index
    %c0_2 = arith.constant 0 : index
    %c0_3 = arith.constant 0 : index
    %10 = vector.load %arg2[%c0_1, %c0_2, %c0_3] : memref<2x16x16xf32, #tpu.memory_space<vmem>>, vector<2x14x16xf32>
    %c0_4 = arith.constant 0 : index
    %c1_5 = arith.constant 1 : index
    %c0_6 = arith.constant 0 : index
    %11 = vector.load %arg2[%c0_4, %c1_5, %c0_6] : memref<2x16x16xf32, #tpu.memory_space<vmem>>, vector<2x14x16xf32>
    %c0_7 = arith.constant 0 : index
    %c2_8 = arith.constant 2 : index
    %c0_9 = arith.constant 0 : index
    %12 = vector.load %arg2[%c0_7, %c2_8, %c0_9] : memref<2x16x16xf32, #tpu.memory_space<vmem>>, vector<2x14x16xf32>
    %13 = vector.broadcast %0 : f32 to vector<2x14x16xf32>
    %14 = arith.mulf %13, %10 : vector<2x14x16xf32>
    %15 = vector.broadcast %3 : f32 to vector<2x14x16xf32>
    %16 = arith.mulf %15, %11 : vector<2x14x16xf32>
    %17 = arith.addf %14, %16 : vector<2x14x16xf32>
    %18 = vector.broadcast %6 : f32 to vector<2x14x16xf32>
    %19 = arith.mulf %18, %12 : vector<2x14x16xf32>
    %20 = arith.addf %17, %19 : vector<2x14x16xf32>
    %21 = vector.broadcast %1 : f32 to vector<2x14x16xf32>
    %22 = arith.mulf %21, %10 : vector<2x14x16xf32>
    %23 = vector.broadcast %4 : f32 to vector<2x14x16xf32>
    %24 = arith.mulf %23, %11 : vector<2x14x16xf32>
    %25 = arith.addf %22, %24 : vector<2x14x16xf32>
    %26 = vector.broadcast %7 : f32 to vector<2x14x16xf32>
    %27 = arith.mulf %26, %12 : vector<2x14x16xf32>
    %28 = arith.addf %25, %27 : vector<2x14x16xf32>
    %29 = vector.broadcast %2 : f32 to vector<2x14x16xf32>
    %30 = arith.mulf %29, %10 : vector<2x14x16xf32>
    %31 = vector.broadcast %5 : f32 to vector<2x14x16xf32>
    %32 = arith.mulf %31, %11 : vector<2x14x16xf32>
    %33 = arith.addf %30, %32 : vector<2x14x16xf32>
    %34 = vector.broadcast %8 : f32 to vector<2x14x16xf32>
    %35 = arith.mulf %34, %12 : vector<2x14x16xf32>
    %36 = arith.addf %33, %35 : vector<2x14x16xf32>
    %37 = vector.extract_strided_slice %20 {offsets = [0, 0, 0], sizes = [2, 14, 14], strides = [1, 1, 1]} : vector<2x14x16xf32> to vector<2x14x14xf32>
    %38 = vector.broadcast %9 : f32 to vector<2x14x14xf32>
    %39 = arith.addf %38, %37 : vector<2x14x14xf32>
    %40 = vector.extract_strided_slice %28 {offsets = [0, 0, 1], sizes = [2, 14, 14], strides = [1, 1, 1]} : vector<2x14x16xf32> to vector<2x14x14xf32>
    %41 = arith.addf %39, %40 : vector<2x14x14xf32>
    %42 = vector.extract_strided_slice %36 {offsets = [0, 0, 2], sizes = [2, 14, 14], strides = [1, 1, 1]} : vector<2x14x16xf32> to vector<2x14x14xf32>
    %43 = arith.addf %41, %42 : vector<2x14x14xf32>
    %c0_10 = arith.constant 0 : index
    %c0_11 = arith.constant 0 : index
    %c0_12 = arith.constant 0 : index
    %44 = vector.load %arg3[%c0_10, %c0_11, %c0_12] : memref<2x14x14xf32, #tpu.memory_space<vmem>>, vector<2x14x14xf32>
    tpu.vector_store %arg3[%c0_10, %c0_11, %c0_12], %43 {strides = array<i32>} : memref<2x14x14xf32, #tpu.memory_space<vmem>>, vector<2x14x14xf32>,
    return
  }
}

</mosaic_0001>

<llo_original>
// kernel: tpu_custom_call.1
$region0: #{tpu_custom_call.1}
  #allocation0 [shape = 'u32[]', space=smem, size = 0x4, offset = 0x4, fixed_abs, tag = 'smem constant byte address 0x4 - core index']
  #allocation1 [shape = 'u32[72,128]{1,0:T(1,128)}', space=vmem, size = 0x9000, scoped, tag = 'internal scratch']
  #allocation2 [shape = 'f32[1]{0:T(128)S(6)}', space=smem, size = 0x200, scoped, tag = 'scoped memory for tpu_custom_call.1']
  %s0 = inlined_call_operand.vmem [shape: f32[9], index: 0, kind: input, shape index: {}]
  %s1 = inlined_call_operand.<no memory space> [shape: f32[1], index: 1, kind: input, shape index: {}]
  %s2 = inlined_call_operand.hbm [shape: f32[2,16,16], index: 2, kind: input, shape index: {}]
  %s3 = inlined_call_operand.vmem [shape: f32[2,14,14], index: 3, kind: output, shape index: {}]
  %s4 = sld [smem:[#allocation0]]
  $region30: #{tpu_custom_call.1} parent=0
    _
  %s6 = ssub.s32 1, %s4
  %s7 = scalar_select 0, %s6, %s4
  %8 = sst [smem:[#allocation2]] %s1
  $region1: #{tpu_custom_call.1} parent=0
    #allocation3 [shape = 'u8[512]{0}', space=smem, size = 0x200, scoped, tag = 'input window, operand 0, single buffered']
    #allocation4 [shape = 's32[1]{0}', space=sflag, size = 0x4, scoped, tag = 'scoped memory for tpu_custom_call.1']
    #allocation5 [shape = 's32[1]{0}', space=sflag, size = 0x4, scoped, tag = 'scoped memory for tpu_custom_call.1']
    #allocation6 [shape = 'u8[16384]{0}', space=vmem, size = 0x4000, scoped, tag = 'input window, operand 2, single buffered']
    %9 = vsyncpa [#allocation5], 0
    %10 = vsyncpa [#allocation4], 0
    // Predicated region
    $region2: #{tpu_custom_call.1} parent=1 // pred_check
      _
    $region3: #{tpu_custom_call.1} parent=1 // pred_check_branch
      %12 = sbr.rel (0) target = $region5
    $region4: #{tpu_custom_call.1} parent=1 // pred_region
      %14 = vsyncadd [#allocation5], 0
      %s16 = sshll.u32 %s0, 4
      %s17 = int_to_ptr.vmem [resolvable:$true] %s16
      %19 = dma.vmem_to_smem %s17, 16, [#allocation3], [#allocation5]
    $region5: #{tpu_custom_call.1} parent=1 // pred_fallthru
      _
    // Predicated region
    $region6: #{tpu_custom_call.1} parent=1 // pred_check
      _
    $region7: #{tpu_custom_call.1} parent=1 // pred_check_branch
      %21 = sbr.rel (0) target = $region9
    $region8: #{tpu_custom_call.1} parent=1 // pred_region
      _
    $region9: #{tpu_custom_call.1} parent=1 // pred_fallthru
      _
    // Predicated region
    $region10: #{tpu_custom_call.1} parent=1 // pred_check
      _
    $region11: #{tpu_custom_call.1} parent=1 // pred_check_branch
      %23 = sbr.rel (0) target = $region13
    $region12: #{tpu_custom_call.1} parent=1 // pred_region
      %25 = vsyncadd [#allocation4], 0
      %s26 = sshll.u32 %s2, 4
      %s27 = int_to_ptr.hbm [resolvable:$true] %s26
      %s28 = sshll.u32 [#allocation6], 4
      %s29 = int_to_ptr.vmem [resolvable:$true] %s28
      %34 = dma.hbm_to_vmem [thread:$0]  %s27, 512, %s29, [#allocation4], 128, 128, 8
    $region13: #{tpu_custom_call.1} parent=1 // pred_fallthru
      _
    // Predicated region
    $region14: #{tpu_custom_call.1} parent=1 // pred_check
      _
    $region15: #{tpu_custom_call.1} parent=1 // pred_check_branch
      %36 = sbr.rel (0) target = $region17
    $region16: #{tpu_custom_call.1} parent=1 // pred_region
      %38 = dma.done [#allocation5], 16
    $region17: #{tpu_custom_call.1} parent=1 // pred_fallthru
      _
    // Predicated region
    $region18: #{tpu_custom_call.1} parent=1 // pred_check
      _
    $region19: #{tpu_custom_call.1} parent=1 // pred_check_branch
      %40 = sbr.rel (0) target = $region21
    $region20: #{tpu_custom_call.1} parent=1 // pred_region
      %42 = dma.done [#allocation4], 512
    $region21: #{tpu_custom_call.1} parent=1 // pred_fallthru
      _
    %43 = sfence
    %s44 = sld [smem:[#allocation3]]
    %s45 = sld [smem:[#allocation3 + $0x1]]
    %s46 = sld [smem:[#allocation3 + $0x2]]
    %s47 = sld [smem:[#allocation3 + $0x3]]
    %s48 = sld [smem:[#allocation3 + $0x4]]
    %s49 = sld [smem:[#allocation3 + $0x5]]
    %s50 = sld [smem:[#allocation3 + $0x6]]
    %s51 = sld [smem:[#allocation3 + $0x7]]
    %s52 = sld [smem:[#allocation3 + $0x8]]
    %s53 = sld [smem:[#allocation2]]
    %v54 = vld [vmem:[#allocation6] sm:$0xff]
    %v55 = vld [vmem:[#allocation6 + $0x8] sm:$0x3f]
    %v56 = vld [vmem:[#allocation6 + $0x10] sm:$0xff]
    %v57 = vld [vmem:[#allocation6 + $0x18] sm:$0x3f]
    %v58 = vld [vmem:[#allocation6 + $0x1] sm:$0xff]
    %v59 = vld [vmem:[#allocation6 + $0x9] sm:$0x3f]
    %v60 = vld [vmem:[#allocation6 + $0x11] sm:$0xff]
    %v61 = vld [vmem:[#allocation6 + $0x19] sm:$0x3f]
    %v62 = vld [vmem:[#allocation6 + $0x2] sm:$0xff]
    %v63 = vld [vmem:[#allocation6 + $0xa] sm:$0x3f]
    %v64 = vld [vmem:[#allocation6 + $0x12] sm:$0xff]
    %v65 = vld [vmem:[#allocation6 + $0x1a] sm:$0x3f]
    %v66 = vstv %s44
    %v67 = vmul.f32 %v66, %v54
    %v68 = vmul.f32 %v66, %v55
    %v69 = vmul.f32 %v66, %v56
    %v70 = vmul.f32 %v66, %v57
    %v71 = vstv %s47
    %v72 = vmul.f32 %v71, %v58
    %v73 = vmul.f32 %v71, %v59
    %v74 = vmul.f32 %v71, %v60
    %v75 = vmul.f32 %v71, %v61
    %v76 = vadd.f32 %v67, %v72
    %v77 = vadd.f32 %v68, %v73
    %v78 = vadd.f32 %v69, %v74
    %v79 = vadd.f32 %v70, %v75
    %v80 = vstv %s50
    %v81 = vmul.f32 %v80, %v62
    %v82 = vmul.f32 %v80, %v63
    %v83 = vmul.f32 %v80, %v64
    %v84 = vmul.f32 %v80, %v65
    %v85 = vadd.f32 %v76, %v81
    %v86 = vadd.f32 %v77, %v82
    %v87 = vadd.f32 %v78, %v83
    %v88 = vadd.f32 %v79, %v84
    %v89 = vstv %s45
    %v90 = vmul.f32 %v89, %v54
    %v91 = vmul.f32 %v89, %v55
    %v92 = vmul.f32 %v89, %v56
    %v93 = vmul.f32 %v89, %v57
    %v94 = vstv %s48
    %v95 = vmul.f32 %v94, %v58
    %v96 = vmul.f32 %v94, %v59
    %v97 = vmul.f32 %v94, %v60
    %v98 = vmul.f32 %v94, %v61
    %v99 = vadd.f32 %v90, %v95
    %v100 = vadd.f32 %v91, %v96
    %v101 = vadd.f32 %v92, %v97
    %v102 = vadd.f32 %v93, %v98
    %v103 = vstv %s51
    %v104 = vmul.f32 %v103, %v62
    %v105 = vmul.f32 %v103, %v63
    %v106 = vmul.f32 %v103, %v64
    %v107 = vmul.f32 %v103, %v65
    %v108 = vadd.f32 %v99, %v104
    %v109 = vadd.f32 %v100, %v105
    %v110 = vadd.f32 %v101, %v106
    %v111 = vadd.f32 %v102, %v107
    %v112 = vstv %s46
    %v113 = vmul.f32 %v112, %v54
    %v114 = vmul.f32 %v112, %v55
    %v115 = vmul.f32 %v112, %v56
    %v116 = vmul.f32 %v112, %v57
    %v117 = vstv %s49
    %v118 = vmul.f32 %v117, %v58
    %v119 = vmul.f32 %v117, %v59
    %v120 = vmul.f32 %v117, %v60
    %v121 = vmul.f32 %v117, %v61
    %v122 = vadd.f32 %v113, %v118
    %v123 = vadd.f32 %v114, %v119
    %v124 = vadd.f32 %v115, %v120
    %v125 = vadd.f32 %v116, %v121
    %v126 = vstv %s52
    %v127 = vmul.f32 %v126, %v62
    %v128 = vmul.f32 %v126, %v63
    %v129 = vmul.f32 %v126, %v64
    %v130 = vmul.f32 %v126, %v65
    %v131 = vadd.f32 %v122, %v127
    %v132 = vadd.f32 %v123, %v128
    %v133 = vadd.f32 %v124, %v129
    %v134 = vadd.f32 %v125, %v130
    %v135 = vstv %s53
    %v136 = vadd.f32 %v135, %v85
    %v137 = vadd.f32 %v135, %v86
    %v138 = vadd.f32 %v135, %v87
    %v139 = vadd.f32 %v135, %v88
    %144 = vrot.lane.b32.xlu0 %v108, 127
    %v145 = vpop.permute.xlu0 %144
    %146 = vrot.lane.b32.xlu0 %v109, 127
    %v147 = vpop.permute.xlu0 %146
    %148 = vrot.lane.b32.xlu0 %v110, 127
    %v149 = vpop.permute.xlu0 %148
    %150 = vrot.lane.b32.xlu0 %v111, 127
    %v151 = vpop.permute.xlu0 %150
    %v156 = vadd.f32 %v136, %v145
    %v157 = vadd.f32 %v137, %v147
    %v158 = vadd.f32 %v138, %v149
    %v159 = vadd.f32 %v139, %v151
    %164 = vrot.lane.b32.xlu0 %v131, 126
    %v165 = vpop.permute.xlu0 %164
    %166 = vrot.lane.b32.xlu0 %v132, 126
    %v167 = vpop.permute.xlu0 %166
    %168 = vrot.lane.b32.xlu0 %v133, 126
    %v169 = vpop.permute.xlu0 %168
    %170 = vrot.lane.b32.xlu0 %v134, 126
    %v171 = vpop.permute.xlu0 %170
    %v176 = vadd.f32 %v156, %v165
    %v177 = vadd.f32 %v157, %v167
    %v178 = vadd.f32 %v158, %v169
    %v179 = vadd.f32 %v159, %v171
    %vm180 = vcmask 113664
    %181 = vst.msk [vmem:[%s3] sm:$0xff] %vm180, %v176
    %vm182 = vcmask 111616
    %183 = vst.msk [vmem:[%s3 + $0x8] sm:$0x3f] %vm182, %v177
    %184 = vst.msk [vmem:[%s3 + $0x10] sm:$0xff] %vm180, %v178
    %185 = vst.msk [vmem:[%s3 + $0x18] sm:$0x3f] %vm182, %v179
    // Predicated region
    $region22: #{tpu_custom_call.1} parent=1 // pred_check
      _
    $region23: #{tpu_custom_call.1} parent=1 // pred_check_branch
      %187 = sbr.rel (0) target = $region25
    $region24: #{tpu_custom_call.1} parent=1 // pred_region
      _
    $region25: #{tpu_custom_call.1} parent=1 // pred_fallthru
      _
    // Predicated region
    $region26: #{tpu_custom_call.1} parent=1 // pred_check
      _
    $region27: #{tpu_custom_call.1} parent=1 // pred_check_branch
      %189 = sbr.rel (0) target = $region29
    $region28: #{tpu_custom_call.1} parent=1 // pred_region
      _
    $region29: #{tpu_custom_call.1} parent=1 // pred_fallthru
      _
    %190 = vsyncpa [#allocation4], 1
    %191 = vsyncpa [#allocation5], 1

</llo_original>
